<compile_context>
chip_gen: v7x
topology: tpu7x:2x2x1
jax: 0.10.0
libtpu: 0.0.40
codegen_flags: <defaults>
</compile_context>

<pallas_src>
import functools

import jax
import jax.numpy as jnp
from jax.experimental import pallas as pl
from jax.experimental.pallas import tpu as pltpu

_IN, _HID, _OUT = 16, 8, 4     # fc1: 16->8, fc2: 8->4
_PACK = 8                      # samples packed per row -> 128-lane-dense input
_SUBLANE = 8
_LANE = _PACK * _IN            # 128


def _round_up(n: int, m: int) -> int:
    return ((n + m - 1) // m) * m


def simplenn_kernel(x_ref, w1_ref, b1_ref, w2_ref, b2_ref, o_ref):
    # x: [TR, 128] (8 samples/row), w1_bd: [128, 64], b1: [1, 64],
    # w2_bd: [64, 32], b2: [1, 32], o: [TR, 32]
    x = x_ref[...]
    # fc1 (+bias); f32 MXU accumulation even if x streams in as bf16.
    h = jnp.dot(x, w1_ref[...], preferred_element_type=jnp.float32) + b1_ref[...]
    # ReLU followed by torch.clamp(0, 1) == clip(0, 1).
    h = jnp.clip(h, 0.0, 1.0)
    # fc2 (+bias), no activation.
    out = jnp.dot(h, w2_ref[...], preferred_element_type=jnp.float32) + b2_ref[...]
    o_ref[...] = out.astype(o_ref.dtype)


def simplenn_forward(x, w1, b1, w2, b2, *, tile_rows=4096, stream_dtype=None):
    """x: [B, 16].  w1: [8, 16], b1: [8], w2: [4, 8], b2: [4] (PyTorch layout)."""
    B, in_f = x.shape
    assert in_f == _IN
    xd = jnp.float32 if stream_dtype is None else stream_dtype
    f32 = jnp.float32

    # Pad the batch to a multiple of 64 samples (= 8 packed sublanes).  This is
    # independent of the tile size, so waste is <= 63 samples; when B is
    # already a multiple of 64 the pad is skipped and the packed reshape below
    # is a zero-cost view of x in its native layout.
    b_pad = _round_up(B, _PACK * _SUBLANE)
    xs = x.astype(xd)
    if b_pad != B:
        xs = jnp.pad(xs, ((0, b_pad - B), (0, 0)))   # padded rows are zeros
    R = b_pad // _PACK
    x_packed = xs.reshape(R, _LANE)                  # free: rows are contiguous

    # Tiny block-diagonal weights (built once; negligible vs. x traffic).
    # Weights/biases stay f32-resident in VMEM even when x streams as bf16.
    eye = jnp.eye(_PACK, dtype=f32)
    w1_bd = jnp.kron(eye, w1.astype(f32).T)                       # [128, 64]
    w2_bd = jnp.kron(eye, w2.astype(f32).T)                       # [ 64, 32]
    b1_bd = jnp.tile(b1.astype(f32), _PACK).reshape(1, _PACK * _HID)
    b2_bd = jnp.tile(b2.astype(f32), _PACK).reshape(1, _PACK * _OUT)

    # Tile the packed-row axis.  Target >= ~2 MiB of DMA per step, but keep the
    # grid >= 2 steps so the "parallel" axis can shard across v7x's two TCs.
    tile_rows = max(_SUBLANE, _round_up(tile_rows, _SUBLANE))
    if R <= 2 * _SUBLANE:
        tr = R                                   # one block spanning everything
    else:
        tr = min(tile_rows, _round_up(pl.cdiv(R, 2), _SUBLANE))
    grid = (pl.cdiv(R, tr),)                     # partial boundary block is OK

    xbytes = jnp.finfo(xd).bits // 8
    cost = pl.CostEstimate(
        flops=2 * R * (_LANE * _PACK * _HID + _PACK * _HID * _PACK * _OUT),
        bytes_accessed=R * (_LANE * xbytes + _PACK * _OUT * 4)
        + (_LANE * _PACK * _HID + _PACK * _HID * _PACK * _OUT + _PACK * (_HID + _OUT)) * 4,
        transcendentals=0,
    )

    out_packed = pl.pallas_call(
        simplenn_kernel,
        out_shape=jax.ShapeDtypeStruct((R, _PACK * _OUT), jnp.float32),
        grid_spec=pl.GridSpec(
            grid=grid,
            in_specs=[
                pl.BlockSpec((tr, _LANE), lambda i: (i, 0)),               # x tile
                pl.BlockSpec((_LANE, _PACK * _HID), lambda i: (0, 0)),     # W1_bd (resident)
                pl.BlockSpec((1, _PACK * _HID), lambda i: (0, 0)),         # b1 (resident)
                pl.BlockSpec((_PACK * _HID, _PACK * _OUT), lambda i: (0, 0)),  # W2_bd (resident)
                pl.BlockSpec((1, _PACK * _OUT), lambda i: (0, 0)),         # b2 (resident)
            ],
            out_specs=pl.BlockSpec((tr, _PACK * _OUT), lambda i: (i, 0)),
        ),
        compiler_params=pltpu.CompilerParams(
            dimension_semantics=("parallel",),
        ),
        cost_estimate=cost,
    )(x_packed, w1_bd, b1_bd, w2_bd, b2_bd)

    out = out_packed.reshape(b_pad, _OUT)        # free reshape back to [B_pad, 4]
    return out if b_pad == B else out[:B]        # drop padded tail (if any)


def init_params(key):
    # nn.Linear-style init (uniform +/- 1/sqrt(fan_in)), PyTorch [out, in] layout.
    k1, k2, k3, k4 = jax.random.split(key, 4)
    bound1 = 1.0 / jnp.sqrt(float(_IN))
    bound2 = 1.0 / jnp.sqrt(float(_HID))
    w1 = jax.random.uniform(k1, (_HID, _IN), jnp.float32, -bound1, bound1)
    b1 = jax.random.uniform(k2, (_HID,), jnp.float32, -bound1, bound1)
    w2 = jax.random.uniform(k3, (_OUT, _HID), jnp.float32, -bound2, bound2)
    b2 = jax.random.uniform(k4, (_OUT,), jnp.float32, -bound2, bound2)
    return w1, b1, w2, b2


def reference_forward(x, w1, b1, w2, b2):
    h = jnp.clip(x @ w1.T + b1, 0.0, 1.0)
    return h @ w2.T + b2


if __name__ == "__main__":
    key = jax.random.PRNGKey(0)
    kp, kx1, kx2, kx3 = jax.random.split(key, 4)
    w1, b1, w2, b2 = init_params(kp)

    fwd = jax.jit(simplenn_forward)

    # Small batch: single grid step.
    B = 8
    x = jax.random.normal(kx1, (B, _IN), jnp.float32)
    out = jax.block_until_ready(fwd(x, w1, b1, w2, b2))
    ref = reference_forward(x, w1, b1, w2, b2)
    assert out.shape == (B, _OUT)
    assert jnp.allclose(out, ref, atol=1e-5, rtol=1e-5)

    # Ragged batch (not a multiple of 64): edge pad + multi-step grid with a
    # partial boundary block.
    B2 = 300
    x2 = jax.random.normal(kx2, (B2, _IN), jnp.float32)
    out2 = jax.block_until_ready(fwd(x2, w1, b1, w2, b2))
    ref2 = reference_forward(x2, w1, b1, w2, b2)
    assert out2.shape == (B2, _OUT)
    assert jnp.allclose(out2, ref2, atol=1e-5, rtol=1e-5)

    # bf16 input streaming (bandwidth option); f32 accumulation / activations.
    B3 = 1024
    x3 = jax.random.normal(kx3, (B3, _IN), jnp.float32)
    fwd_bf16 = jax.jit(functools.partial(simplenn_forward, stream_dtype=jnp.bfloat16))
    out3 = jax.block_until_ready(fwd_bf16(x3, w1, b1, w2, b2))
    ref3 = reference_forward(x3.astype(jnp.bfloat16).astype(jnp.float32), w1, b1, w2, b2)
    assert out3.shape == (B3, _OUT)
    assert jnp.allclose(out3, ref3, atol=1e-4, rtol=1e-4)

    print("KERNEL_OK")
</pallas_src>

<mosaic_0001>
module attributes {stable_mosaic.version = 11 : i64} {
  func.func @simplenn_kernel(%arg0: i32, %arg1: memref<8x128xf32, #tpu.memory_space<vmem>>, %arg2: memref<128x64xf32, #tpu.memory_space<vmem>>, %arg3: memref<1x64xf32, #tpu.memory_space<vmem>>, %arg4: memref<64x32xf32, #tpu.memory_space<vmem>>, %arg5: memref<1x32xf32, #tpu.memory_space<vmem>>, %arg6: memref<8x32xf32, #tpu.memory_space<vmem>>) attributes {dimension_semantics = [#tpu.dimension_semantics<parallel>], iteration_bounds = array<i64: 1>, scalar_prefetch = 0 : i64, scratch_operands = 0 : i64, tpu.core_type = #tpu.core_type<tc>, window_params = [{transform_indices = @transform_0, window_bounds = array<i64: 8, 128>}, {pipeline_mode = #tpu.pipeline_mode<synchronous>, transform_indices = @transform_1, window_bounds = array<i64: 128, 64>}, {pipeline_mode = #tpu.pipeline_mode<synchronous>, transform_indices = @transform_2, window_bounds = array<i64: 1, 64>}, {pipeline_mode = #tpu.pipeline_mode<synchronous>, transform_indices = @transform_3, window_bounds = array<i64: 64, 32>}, {pipeline_mode = #tpu.pipeline_mode<synchronous>, transform_indices = @transform_4, window_bounds = array<i64: 1, 32>}, {transform_indices = @transform_5, window_bounds = array<i64: 8, 32>}]} {
    %c0 = arith.constant 0 : index
    %c0_0 = arith.constant 0 : index
    %0 = vector.load %arg1[%c0, %c0_0] : memref<8x128xf32, #tpu.memory_space<vmem>>, vector<8x128xf32>
    %c0_1 = arith.constant 0 : index
    %c0_2 = arith.constant 0 : index
    %1 = vector.load %arg2[%c0_1, %c0_2] : memref<128x64xf32, #tpu.memory_space<vmem>>, vector<128x64xf32>
    %cst = arith.constant dense<0.000000e+00> : vector<8x64xf32>
    %2 = tpu.matmul %0, %1, %cst {dimension_numbers = #tpu.dot_dimension_numbers<[1], [0], [0], [1], [0, 0, 1, 1], [], []>} : vector<8x128xf32>, vector<128x64xf32>, vector<8x64xf32> -> vector<8x64xf32>
    %c0_3 = arith.constant 0 : index
    %c0_4 = arith.constant 0 : index
    %3 = vector.load %arg3[%c0_3, %c0_4] : memref<1x64xf32, #tpu.memory_space<vmem>>, vector<1x64xf32>
    %4 = vector.broadcast %3 : vector<1x64xf32> to vector<8x64xf32>
    %5 = arith.addf %2, %4 : vector<8x64xf32>
    %cst_5 = arith.constant 0.000000e+00 : f32
    %cst_6 = arith.constant 1.000000e+00 : f32
    %6 = vector.broadcast %cst_5 : f32 to vector<8x64xf32>
    %7 = arith.maximumf %6, %5 : vector<8x64xf32>
    %8 = vector.broadcast %cst_6 : f32 to vector<8x64xf32>
    %9 = arith.minimumf %8, %7 : vector<8x64xf32>
    %c0_7 = arith.constant 0 : index
    %c0_8 = arith.constant 0 : index
    %10 = vector.load %arg4[%c0_7, %c0_8] : memref<64x32xf32, #tpu.memory_space<vmem>>, vector<64x32xf32>
    %cst_9 = arith.constant dense<0.000000e+00> : vector<8x32xf32>
    %11 = tpu.matmul %9, %10, %cst_9 {dimension_numbers = #tpu.dot_dimension_numbers<[1], [0], [0], [1], [0, 0, 1, 1], [], []>} : vector<8x64xf32>, vector<64x32xf32>, vector<8x32xf32> -> vector<8x32xf32>
    %c0_10 = arith.constant 0 : index
    %c0_11 = arith.constant 0 : index
    %12 = vector.load %arg5[%c0_10, %c0_11] : memref<1x32xf32, #tpu.memory_space<vmem>>, vector<1x32xf32>
    %13 = vector.broadcast %12 : vector<1x32xf32> to vector<8x32xf32>
    %14 = arith.addf %11, %13 : vector<8x32xf32>
    %c0_12 = arith.constant 0 : index
    %c0_13 = arith.constant 0 : index
    %15 = vector.load %arg6[%c0_12, %c0_13] : memref<8x32xf32, #tpu.memory_space<vmem>>, vector<8x32xf32>
    tpu.vector_store %arg6[%c0_12, %c0_13], %14 {strides = array<i32>} : memref<8x32xf32, #tpu.memory_space<vmem>>, vector<8x32xf32>,
    return
  }
  func.func @transform_0(%arg0: i32) -> (i32, i32) {
    %c0_i32 = arith.constant 0 : i32
    %c0_i32_0 = arith.constant 0 : i32
    return %arg0, %c0_i32 : i32, i32
  }
  func.func @transform_1(%arg0: i32) -> (i32, i32) {
    %c0_i32 = arith.constant 0 : i32
    %c0_i32_0 = arith.constant 0 : i32
    %c0_i32_1 = arith.constant 0 : i32
    return %c0_i32, %c0_i32_0 : i32, i32
  }
  func.func @transform_2(%arg0: i32) -> (i32, i32) {
    %c0_i32 = arith.constant 0 : i32
    %c0_i32_0 = arith.constant 0 : i32
    %c0_i32_1 = arith.constant 0 : i32
    return %c0_i32, %c0_i32_0 : i32, i32
  }
  func.func @transform_3(%arg0: i32) -> (i32, i32) {
    %c0_i32 = arith.constant 0 : i32
    %c0_i32_0 = arith.constant 0 : i32
    %c0_i32_1 = arith.constant 0 : i32
    return %c0_i32, %c0_i32_0 : i32, i32
  }
  func.func @transform_4(%arg0: i32) -> (i32, i32) {
    %c0_i32 = arith.constant 0 : i32
    %c0_i32_0 = arith.constant 0 : i32
    %c0_i32_1 = arith.constant 0 : i32
    return %c0_i32, %c0_i32_0 : i32, i32
  }
  func.func @transform_5(%arg0: i32) -> (i32, i32) {
    %c0_i32 = arith.constant 0 : i32
    %c0_i32_0 = arith.constant 0 : i32
    return %arg0, %c0_i32 : i32, i32
  }
}

</mosaic_0001>

<llo_original>
// kernel: tile.13
$region0: #{tile.13}
  #allocation0 [shape = 's32[1]{0}', space=sflag, size = 0x4, scoped, tag = 'scoped memory for tile.13']
  %s0 = inlined_call_operand.vmem [shape: f32[8], index: 0, kind: input, shape index: {}]
  %s1 = inlined_call_operand.vmem [shape: f32[8,8], index: 1, kind: output, shape index: {}]
  // Predicated region
  $region2: #{tile.13} parent=0 // pred_check
    _
  $region3: #{tile.13} parent=0 // pred_check_branch
    %3 = sbr.rel (0) target = $region5
  $region4: #{tile.13} parent=0 // pred_region
    _
  $region5: #{tile.13} parent=0 // pred_fallthru
    _
  %v4 = vld [vmem:[%s0] ss:$0 sm:$0xff]
  %5 = vst [vmem:[%s1] sm:$0xff] %v4

// kernel: tile.14
$region0: #{tile.14}
  %s0 = inlined_call_operand.vmem [shape: f32[8,8], index: 0, kind: input, shape index: {}]
  %s1 = inlined_call_operand.vmem [shape: f32[1,64], index: 1, kind: output, shape index: {}]
  $region1: #{tile.14} parent=0
    #allocation0 [shape = 'u8[4096]{0}', space=vmem, size = 0x1000, scoped, tag = 'scoped mem for output reshape']
    %v2 = vld [vmem:[%s0] sm:$0x1]
    %vm3 = vcmask 64512
    %4 = vst.msk [vmem:[#allocation0] sm:$0x1] %vm3, %v2
    %s5 = scalar_lea.vmem %s0, 7
    %v6 = vld [vmem:[%s5] sm:$0x1]
    %7 = vrot.lane.b32.xlu0 %v6, 56
    %v8 = vpop.permute.xlu0 %7
    %vm9 = vcmask 523712
    %10 = vst.msk [vmem:[#allocation0] sm:$0x1] %vm9, %v8
    %s11 = scalar_lea.vmem %s0, 6
    %v12 = vld [vmem:[%s11] sm:$0x1]
    %13 = vrot.lane.b32.xlu0 %v12, 48
    %v14 = vpop.permute.xlu0 %13
    %vm15 = vcmask 458112
    %16 = vst.msk [vmem:[#allocation0] sm:$0x1] %vm15, %v14
    %s17 = scalar_lea.vmem %s0, 5
    %v18 = vld [vmem:[%s17] sm:$0x1]
    %19 = vrot.lane.b32.xlu0 %v18, 40
    %v20 = vpop.permute.xlu0 %19
    %vm21 = vcmask 392512
    %22 = vst.msk [vmem:[#allocation0] sm:$0x1] %vm21, %v20
    %s23 = scalar_lea.vmem %s0, 4
    %v24 = vld [vmem:[%s23] sm:$0x1]
    %25 = vrot.lane.b32.xlu0 %v24, 32
    %v26 = vpop.permute.xlu0 %25
    %vm27 = vcmask 326912
    %28 = vst.msk [vmem:[#allocation0] sm:$0x1] %vm27, %v26
    %s29 = scalar_lea.vmem %s0, 3
    %v30 = vld [vmem:[%s29] sm:$0x1]
    %31 = vrot.lane.b32.xlu0 %v30, 24
    %v32 = vpop.permute.xlu0 %31
    %vm33 = vcmask 261312
    %34 = vst.msk [vmem:[#allocation0] sm:$0x1] %vm33, %v32
    %s35 = scalar_lea.vmem %s0, 2
    %v36 = vld [vmem:[%s35] sm:$0x1]
    %37 = vrot.lane.b32.xlu0 %v36, 16
    %v38 = vpop.permute.xlu0 %37
    %vm39 = vcmask 195712
    %40 = vst.msk [vmem:[#allocation0] sm:$0x1] %vm39, %v38
    %s41 = scalar_lea.vmem %s0, 1
    %v42 = vld [vmem:[%s41] sm:$0x1]
    %43 = vrot.lane.b32.xlu0 %v42, 8
    %v44 = vpop.permute.xlu0 %43
    %vm45 = vcmask 130112
    %46 = vst.msk [vmem:[#allocation0] sm:$0x1] %vm45, %v44
    %s48 = sshllo.u32 0, 1
    %v50 = vld [vmem:[#allocation0] sm:%s48]
    %s51 = sshllo.u32 0, 1
    %52 = vst [vmem:[%s1] sm:%s51] %v50

// kernel: tile.18
$region0: #{tile.18}
  #allocation0 [shape = 's32[1]{0}', space=sflag, size = 0x4, scoped, tag = 'scoped memory for tile.18']
  %s0 = inlined_call_operand.vmem [shape: f32[4], index: 0, kind: input, shape index: {}]
  %s1 = inlined_call_operand.vmem [shape: f32[8,4], index: 1, kind: output, shape index: {}]
  // Predicated region
  $region2: #{tile.18} parent=0 // pred_check
    _
  $region3: #{tile.18} parent=0 // pred_check_branch
    %3 = sbr.rel (0) target = $region5
  $region4: #{tile.18} parent=0 // pred_region
    _
  $region5: #{tile.18} parent=0 // pred_fallthru
    _
  %v4 = vld [vmem:[%s0] ss:$0 sm:$0xff]
  %5 = vst [vmem:[%s1] sm:$0xff] %v4

// kernel: tile.19
$region0: #{tile.19}
  %s0 = inlined_call_operand.vmem [shape: f32[8,4], index: 0, kind: input, shape index: {}]
  %s1 = inlined_call_operand.vmem [shape: f32[1,32], index: 1, kind: output, shape index: {}]
  $region1: #{tile.19} parent=0
    #allocation0 [shape = 'u8[4096]{0}', space=vmem, size = 0x1000, scoped, tag = 'scoped mem for output reshape']
    %v2 = vld [vmem:[%s0] sm:$0x1]
    %vm3 = vcmask 31744
    %4 = vst.msk [vmem:[#allocation0] sm:$0x1] %vm3, %v2
    %s5 = scalar_lea.vmem %s0, 7
    %v6 = vld [vmem:[%s5] sm:$0x1]
    %7 = vrot.lane.b32.xlu0 %v6, 28
    %v8 = vpop.permute.xlu0 %7
    %vm9 = vcmask 261344
    %10 = vst.msk [vmem:[#allocation0] sm:$0x1] %vm9, %v8
    %s11 = scalar_lea.vmem %s0, 6
    %v12 = vld [vmem:[%s11] sm:$0x1]
    %13 = vrot.lane.b32.xlu0 %v12, 24
    %v14 = vpop.permute.xlu0 %13
    %vm15 = vcmask 228544
    %16 = vst.msk [vmem:[#allocation0] sm:$0x1] %vm15, %v14
    %s17 = scalar_lea.vmem %s0, 5
    %v18 = vld [vmem:[%s17] sm:$0x1]
    %19 = vrot.lane.b32.xlu0 %v18, 20
    %v20 = vpop.permute.xlu0 %19
    %vm21 = vcmask 195744
    %22 = vst.msk [vmem:[#allocation0] sm:$0x1] %vm21, %v20
    %s23 = scalar_lea.vmem %s0, 4
    %v24 = vld [vmem:[%s23] sm:$0x1]
    %25 = vrot.lane.b32.xlu0 %v24, 16
    %v26 = vpop.permute.xlu0 %25
    %vm27 = vcmask 162944
    %28 = vst.msk [vmem:[#allocation0] sm:$0x1] %vm27, %v26
    %s29 = scalar_lea.vmem %s0, 3
    %v30 = vld [vmem:[%s29] sm:$0x1]
    %31 = vrot.lane.b32.xlu0 %v30, 12
    %v32 = vpop.permute.xlu0 %31
    %vm33 = vcmask 130144
    %34 = vst.msk [vmem:[#allocation0] sm:$0x1] %vm33, %v32
    %s35 = scalar_lea.vmem %s0, 2
    %v36 = vld [vmem:[%s35] sm:$0x1]
    %37 = vrot.lane.b32.xlu0 %v36, 8
    %v38 = vpop.permute.xlu0 %37
    %vm39 = vcmask 97344
    %40 = vst.msk [vmem:[#allocation0] sm:$0x1] %vm39, %v38
    %s41 = scalar_lea.vmem %s0, 1
    %v42 = vld [vmem:[%s41] sm:$0x1]
    %43 = vrot.lane.b32.xlu0 %v42, 4
    %v44 = vpop.permute.xlu0 %43
    %vm45 = vcmask 64544
    %46 = vst.msk [vmem:[#allocation0] sm:$0x1] %vm45, %v44
    %s48 = sshllo.u32 0, 1
    %v50 = vld [vmem:[#allocation0] sm:%s48]
    %s51 = sshllo.u32 0, 1
    %52 = vst [vmem:[%s1] sm:%s51] %v50

// kernel: simplenn_forward.1
$region0: #{simplenn_forward.1}
  #allocation0 [shape = 'u32[]', space=smem, size = 0x4, offset = 0x4, fixed_abs, tag = 'smem constant byte address 0x4 - core index']
  #allocation1 [shape = 'u32[144,128]{1,0:T(1,128)}', space=vmem, size = 0x12000, scoped, tag = 'internal scratch']
  %s0 = inlined_call_operand.vmem [shape: f32[8,128], index: 0, kind: input, shape index: {}]
  %s1 = inlined_call_operand.vmem [shape: f32[128,64], index: 1, kind: input, shape index: {}]
  %s2 = inlined_call_operand.vmem [shape: f32[1,64], index: 2, kind: input, shape index: {}]
  %s3 = inlined_call_operand.vmem [shape: f32[64,32], index: 3, kind: input, shape index: {}]
  %s4 = inlined_call_operand.vmem [shape: f32[1,32], index: 4, kind: input, shape index: {}]
  %s5 = inlined_call_operand.vmem [shape: f32[8,32], index: 5, kind: output, shape index: {}]
  %s6 = sld [smem:[#allocation0]]
  $region30: #{simplenn_forward.1} parent=0
    _
  %s8 = ssub.s32 1, %s6
  %s9 = scalar_select 0, %s8, %s6
  // Predicated region
  $region2: #{simplenn_forward.1} parent=0 // pred_check
    _
  $region3: #{simplenn_forward.1} parent=0 // pred_check_branch
    %11 = sbr.rel (0) target = $region5
  $region4: #{simplenn_forward.1} parent=0 // pred_region
    _
  $region5: #{simplenn_forward.1} parent=0 // pred_fallthru
    _
  // Predicated region
  $region6: #{simplenn_forward.1} parent=0 // pred_check
    _
  $region7: #{simplenn_forward.1} parent=0 // pred_check_branch
    %13 = sbr.rel (0) target = $region9
  $region8: #{simplenn_forward.1} parent=0 // pred_region
    _
  $region9: #{simplenn_forward.1} parent=0 // pred_fallthru
    _
  // Predicated region
  $region10: #{simplenn_forward.1} parent=0 // pred_check
    _
  $region11: #{simplenn_forward.1} parent=0 // pred_check_branch
    %15 = sbr.rel (0) target = $region13
  $region12: #{simplenn_forward.1} parent=0 // pred_region
    _
  $region13: #{simplenn_forward.1} parent=0 // pred_fallthru
    _
  // Predicated region
  $region14: #{simplenn_forward.1} parent=0 // pred_check
    _
  $region15: #{simplenn_forward.1} parent=0 // pred_check_branch
    %17 = sbr.rel (0) target = $region17
  $region16: #{simplenn_forward.1} parent=0 // pred_region
    _
  $region17: #{simplenn_forward.1} parent=0 // pred_fallthru
    _
  // Predicated region
  $region18: #{simplenn_forward.1} parent=0 // pred_check
    _
  $region19: #{simplenn_forward.1} parent=0 // pred_check_branch
    %19 = sbr.rel (0) target = $region21
  $region20: #{simplenn_forward.1} parent=0 // pred_region
    _
  $region21: #{simplenn_forward.1} parent=0 // pred_fallthru
    _
  %v20 = vld [vmem:[%s0] sm:$0xff]
  %v21 = vld [vmem:[%s1] sm:$0xff]
  %v22 = vld [vmem:[%s1 + $0x8] sm:$0xff]
  %v23 = vld [vmem:[%s1 + $0x10] sm:$0xff]
  %v24 = vld [vmem:[%s1 + $0x18] sm:$0xff]
  %v25 = vld [vmem:[%s1 + $0x20] sm:$0xff]
  %v26 = vld [vmem:[%s1 + $0x28] sm:$0xff]
  %v27 = vld [vmem:[%s1 + $0x30] sm:$0xff]
  %v28 = vld [vmem:[%s1 + $0x38] sm:$0xff]
  %v29 = vld [vmem:[%s1 + $0x40] sm:$0xff]
  %v30 = vld [vmem:[%s1 + $0x48] sm:$0xff]
  %v31 = vld [vmem:[%s1 + $0x50] sm:$0xff]
  %v32 = vld [vmem:[%s1 + $0x58] sm:$0xff]
  %v33 = vld [vmem:[%s1 + $0x60] sm:$0xff]
  %v34 = vld [vmem:[%s1 + $0x68] sm:$0xff]
  %v35 = vld [vmem:[%s1 + $0x70] sm:$0xff]
  %v36 = vld [vmem:[%s1 + $0x78] sm:$0xff]
  %v37 = vld [vmem:[%s2] sm:$0x1]
  %v39 = vlaneseq
  %v40 = vshrl.u32 %v39, 7
  %v41 = vsub.s32 0, %v40
  %v42 = vrot.slane %v37, %v41
  %44 = vmatprep.subr.mxu0 0.0
  %45 = vmatpush1.msra.mxu0 %v21
  %46 = vmatprep.subr.mxu0 0.0
  %47 = vmatpush1.msra.mxu0 %v22
  %48 = vmatprep.subr.mxu0 0.0
  %49 = vmatpush1.msra.mxu0 %v23
  %50 = vmatprep.subr.mxu0 0.0
  %51 = vmatpush1.msra.mxu0 %v24
  %52 = vmatprep.subr.mxu0 0.0
  %53 = vmatpush1.msra.mxu0 %v25
  %54 = vmatprep.subr.mxu0 0.0
  %55 = vmatpush1.msra.mxu0 %v26
  %56 = vmatprep.subr.mxu0 0.0
  %57 = vmatpush1.msra.mxu0 %v27
  %58 = vmatprep.subr.mxu0 0.0
  %59 = vmatpush1.msra.mxu0 %v28
  %60 = vmatprep.subr.mxu0 0.0
  %61 = vmatpush1.msra.mxu0 %v29
  %62 = vmatprep.subr.mxu0 0.0
  %63 = vmatpush1.msra.mxu0 %v30
  %64 = vmatprep.subr.mxu0 0.0
  %65 = vmatpush1.msra.mxu0 %v31
  %66 = vmatprep.subr.mxu0 0.0
  %67 = vmatpush1.msra.mxu0 %v32
  %68 = vmatprep.subr.mxu0 0.0
  %69 = vmatpush1.msra.mxu0 %v33
  %70 = vmatprep.subr.mxu0 0.0
  %71 = vmatpush1.msra.mxu0 %v34
  %72 = vmatprep.subr.mxu0 0.0
  %73 = vmatpush1.msra.mxu0 %v35
  %74 = vmatprep.subr.mxu0 0.0
  %75 = vmatpush1.msra.mxu0 %v36
  %76 = vmatprep.subr.mxu0 0.0
  %77 = vmatpush1.msra.mxu0 0.0
  %78 = vmatprep.subr.mxu0 0.0
  %79 = vmatpush1.msra.mxu0 0.0
  %80 = vmatprep.subr.mxu0 0.0
  %81 = vmatpush1.msra.mxu0 0.0
  %82 = vmatprep.subr.mxu0 0.0
  %83 = vmatpush1.msra.mxu0 0.0
  %84 = vmatprep.subr.mxu0 0.0
  %85 = vmatpush1.msra.mxu0 0.0
  %86 = vmatprep.subr.mxu0 0.0
  %87 = vmatpush1.msra.mxu0 0.0
  %88 = vmatprep.subr.mxu0 0.0
  %89 = vmatpush1.msra.mxu0 0.0
  %90 = vmatprep.subr.mxu0 0.0
  %91 = vmatpush1.msra.mxu0 0.0
  %92 = vmatprep.subr.mxu0 0.0
  %93 = vmatpush1.msra.mxu0 0.0
  %94 = vmatprep.subr.mxu0 0.0
  %95 = vmatpush1.msra.mxu0 0.0
  %96 = vmatprep.subr.mxu0 0.0
  %97 = vmatpush1.msra.mxu0 0.0
  %98 = vmatprep.subr.mxu0 0.0
  %99 = vmatpush1.msra.mxu0 0.0
  %100 = vmatprep.subr.mxu0 0.0
  %101 = vmatpush1.msra.mxu0 0.0
  %102 = vmatprep.subr.mxu0 0.0
  %103 = vmatpush1.msra.mxu0 0.0
  %104 = vmatprep.subr.mxu0 0.0
  %105 = vmatpush1.msra.mxu0 0.0
  %106 = vmatprep.subr.mxu0 0.0
  %107 = vmatpush1.msra.mxu0 0.0
  %108 = vmatprep.mubr.f32.mxu0 0.0
  %109 = vmatmul.mubr.f32.gmra.mrb[0].mxu0 %v20
  %v110 = vpop.f32.mrb[0].mxu0
  %v111 = vadd.f32 %v42, %v110
  %v112 = vpop.f32.mrb[0].mxu0
  %113 = vdwg.mxu0
  %v114 = vmax.f32 %v111, 0.0
  %v115 = vmin.f32 %v114, 1.0
  %v116 = vld [vmem:[%s3] sm:$0xff]
  %v117 = vld [vmem:[%s3 + $0x8] sm:$0xff]
  %v118 = vld [vmem:[%s3 + $0x10] sm:$0xff]
  %v119 = vld [vmem:[%s3 + $0x18] sm:$0xff]
  %v120 = vld [vmem:[%s3 + $0x20] sm:$0xff]
  %v121 = vld [vmem:[%s3 + $0x28] sm:$0xff]
  %v122 = vld [vmem:[%s3 + $0x30] sm:$0xff]
  %v123 = vld [vmem:[%s3 + $0x38] sm:$0xff]
  %v124 = vld [vmem:[%s4] sm:$0x1]
  %v126 = vlaneseq
  %v127 = vshrl.u32 %v126, 7
  %v128 = vsub.s32 0, %v127
  %v129 = vrot.slane %v124, %v128
  %vm131 = vcmask 523264
  %v133 = vsel %vm131, %v115, 0
  %135 = vmatprep.subr.mxu0 0.0
  %136 = vmatpush1.msra.mxu0 %v116
  %137 = vmatprep.subr.mxu0 0.0
  %138 = vmatpush1.msra.mxu0 %v117
  %139 = vmatprep.subr.mxu0 0.0
  %140 = vmatpush1.msra.mxu0 %v118
  %141 = vmatprep.subr.mxu0 0.0
  %142 = vmatpush1.msra.mxu0 %v119
  %143 = vmatprep.subr.mxu0 0.0
  %144 = vmatpush1.msra.mxu0 %v120
  %145 = vmatprep.subr.mxu0 0.0
  %146 = vmatpush1.msra.mxu0 %v121
  %147 = vmatprep.subr.mxu0 0.0
  %148 = vmatpush1.msra.mxu0 %v122
  %149 = vmatprep.subr.mxu0 0.0
  %150 = vmatpush1.msra.mxu0 %v123
  %151 = vmatprep.subr.mxu0 0.0
  %152 = vmatpush1.msra.mxu0 0.0
  %153 = vmatprep.subr.mxu0 0.0
  %154 = vmatpush1.msra.mxu0 0.0
  %155 = vmatprep.subr.mxu0 0.0
  %156 = vmatpush1.msra.mxu0 0.0
  %157 = vmatprep.subr.mxu0 0.0
  %158 = vmatpush1.msra.mxu0 0.0
  %159 = vmatprep.subr.mxu0 0.0
  %160 = vmatpush1.msra.mxu0 0.0
  %161 = vmatprep.subr.mxu0 0.0
  %162 = vmatpush1.msra.mxu0 0.0
  %163 = vmatprep.subr.mxu0 0.0
  %164 = vmatpush1.msra.mxu0 0.0
  %165 = vmatprep.subr.mxu0 0.0
  %166 = vmatpush1.msra.mxu0 0.0
  %167 = vmatprep.subr.mxu0 0.0
  %168 = vmatpush1.msra.mxu0 0.0
  %169 = vmatprep.subr.mxu0 0.0
  %170 = vmatpush1.msra.mxu0 0.0
  %171 = vmatprep.subr.mxu0 0.0
  %172 = vmatpush1.msra.mxu0 0.0
  %173 = vmatprep.subr.mxu0 0.0
  %174 = vmatpush1.msra.mxu0 0.0
  %175 = vmatprep.subr.mxu0 0.0
  %176 = vmatpush1.msra.mxu0 0.0
  %177 = vmatprep.subr.mxu0 0.0
  %178 = vmatpush1.msra.mxu0 0.0
  %179 = vmatprep.subr.mxu0 0.0
  %180 = vmatpush1.msra.mxu0 0.0
  %181 = vmatprep.subr.mxu0 0.0
  %182 = vmatpush1.msra.mxu0 0.0
  %183 = vmatprep.subr.mxu0 0.0
  %184 = vmatpush1.msra.mxu0 0.0
  %185 = vmatprep.subr.mxu0 0.0
  %186 = vmatpush1.msra.mxu0 0.0
  %187 = vmatprep.subr.mxu0 0.0
  %188 = vmatpush1.msra.mxu0 0.0
  %189 = vmatprep.subr.mxu0 0.0
  %190 = vmatpush1.msra.mxu0 0.0
  %191 = vmatprep.subr.mxu0 0.0
  %192 = vmatpush1.msra.mxu0 0.0
  %193 = vmatprep.subr.mxu0 0.0
  %194 = vmatpush1.msra.mxu0 0.0
  %195 = vmatprep.subr.mxu0 0.0
  %196 = vmatpush1.msra.mxu0 0.0
  %197 = vmatprep.subr.mxu0 0.0
  %198 = vmatpush1.msra.mxu0 0.0
  %199 = vmatprep.mubr.f32.mxu0 0.0
  %200 = vmatmul.mubr.f32.gmra.mrb[0].mxu0 %v133
  %v201 = vpop.f32.mrb[0].mxu0
  %v202 = vadd.f32 %v129, %v201
  %v203 = vpop.f32.mrb[0].mxu0
  %204 = vdwg.mxu0
  %vm205 = vcmask 261120
  %206 = vst.msk [vmem:[%s5] sm:$0xff] %vm205, %v202
  // Predicated region
  $region22: #{simplenn_forward.1} parent=0 // pred_check
    _
  $region23: #{simplenn_forward.1} parent=0 // pred_check_branch
    %208 = sbr.rel (0) target = $region25
  $region24: #{simplenn_forward.1} parent=0 // pred_region
    _
  $region25: #{simplenn_forward.1} parent=0 // pred_fallthru
    _
  // Predicated region
  $region26: #{simplenn_forward.1} parent=0 // pred_check
    _
  $region27: #{simplenn_forward.1} parent=0 // pred_check_branch
    %210 = sbr.rel (0) target = $region29
  $region28: #{simplenn_forward.1} parent=0 // pred_region
    _
  $region29: #{simplenn_forward.1} parent=0 // pred_fallthru
    _

</llo_original>
